<compile_context>
chip_gen: v7x
topology: tpu7x:2x2x1
jax: 0.10.0
libtpu: 0.0.40
codegen_flags: <defaults>
</compile_context>

<pallas_src>
import functools

import jax
import jax.numpy as jnp
from jax import lax
from jax.experimental import pallas as pl
from jax.experimental.pallas import tpu as pltpu

MARGIN = 1.2      # margin is not None -> nn.TripletMarginLoss(margin=1.2, p=2)
THRESHOLD = 0.5   # folded into the division-free score >= 0 test below
PD_EPS = 1e-6     # eps used by F.pairwise_distance inside TripletMarginLoss
NORM_EPS = 1e-12  # eps used by F.normalize


def _round_up(x, m):
    return ((x + m - 1) // m) * m


def _triplet_avg_kernel(emb_ref, lab_ref, out_ref, *, n_true, d_true, tm, dp, lp,
                        label_mm_dtype, sel_mm_dtype):
    """One grid step = TM anchor rows vs. all (padded) rows."""
    n_pad = emb_ref.shape[0]
    r0 = pl.multiple_of(pl.program_id(0) * tm, tm)

    # ---- all rows: normalize + gated ones lane (count column) ------------------
    emb = emb_ref[...]                                          # (N_pad, Dp) f32
    nrm = jnp.sqrt(jnp.sum(emb * emb, axis=1, keepdims=True))
    emb_n = emb * (1.0 / jnp.maximum(nrm, NORM_EPS))            # padded rows stay 0

    col_d = lax.broadcasted_iota(jnp.int32, (n_pad, dp), 1)
    row_d = lax.broadcasted_iota(jnp.int32, (n_pad, dp), 0)
    ones_col = ((col_d == dp - 1) & (row_d < n_true)).astype(jnp.float32)
    emb_aug = emb_n + ones_col                                  # last lane = 1 for real rows
    total = jnp.sum(emb_aug, axis=0, keepdims=True)             # (1, Dp); last lane = N_true

    # ---- labels: one bf16 matmul yields score = 3*inter - nnz_i - nnz_j --------
    lab = lab_ref[...]                                          # (N_pad, Lp)
    b_all = (lab != 0).astype(jnp.float32)
    nnz_all = jnp.sum(b_all, axis=1, keepdims=True)             # (N_pad, 1)
    col_l = lax.broadcasted_iota(jnp.int32, (n_pad, lp), 1)
    rhs = jnp.where(col_l == lp - 2, 1.0,
                    jnp.where(col_l == lp - 1, -nnz_all, b_all)).astype(label_mm_dtype)

    lab_t = lab_ref[pl.ds(r0, tm), :]                           # (TM, Lp)
    b_t = (lab_t != 0).astype(jnp.float32)
    nnz_t = jnp.sum(b_t, axis=1, keepdims=True)                 # (TM, 1)
    col_lt = lax.broadcasted_iota(jnp.int32, (tm, lp), 1)
    lhs = jnp.where(col_lt == lp - 2, -nnz_t,
                    jnp.where(col_lt == lp - 1, 1.0, 3.0 * b_t)).astype(label_mm_dtype)

    score = lax.dot_general(lhs, rhs, (((1,), (1,)), ((), ())),
                            preferred_element_type=jnp.float32)  # (TM, N_pad)

    rows = r0 + lax.broadcasted_iota(jnp.int32, (tm, n_pad), 0)
    cols = lax.broadcasted_iota(jnp.int32, (tm, n_pad), 1)
    # score >= 0  <=>  jaccard(i,j) <= 0.5 ; exclude self and padded columns.
    pos = ((score >= 0.0) & (rows != cols) & (cols < n_true)).astype(sel_mm_dtype)

    # ---- ONE selection matmul: pos @ [emb_n | 1] -> pos_sum and pos_cnt --------
    sel = jnp.dot(pos, emb_aug.astype(sel_mm_dtype),
                  preferred_element_type=jnp.float32)            # (TM, Dp)
    pos_cnt = sel[:, dp - 1:dp]                                  # (TM, 1), exact integer
    neg_sum = total - sel                                        # negatives = all real - pos
    neg_cnt = total[:, dp - 1:dp] - pos_cnt                      # = N_true - pos_cnt

    inv_p = pl.reciprocal(jnp.maximum(pos_cnt, 1.0), approx=True)   # EUP, per-row only
    inv_n = pl.reciprocal(jnp.maximum(neg_cnt, 1.0), approx=True)
    pos_mean = sel * inv_p
    neg_mean = neg_sum * inv_n

    # ---- anchors for this tile + TripletMarginLoss(margin, p=2) ----------------
    emb_t = emb_ref[pl.ds(r0, tm), :]                            # (TM, Dp)
    nrm_t = jnp.sqrt(jnp.sum(emb_t * emb_t, axis=1, keepdims=True))
    anc = emb_t * (1.0 / jnp.maximum(nrm_t, NORM_EPS))

    col_dt = lax.broadcasted_iota(jnp.int32, (tm, dp), 1)
    dmask = col_dt < d_true                                      # only the real D feature lanes
    d_ap = jnp.sqrt(jnp.sum(jnp.where(dmask, (anc - pos_mean + PD_EPS) ** 2, 0.0),
                            axis=1, keepdims=True))
    d_an = jnp.sqrt(jnp.sum(jnp.where(dmask, (anc - neg_mean + PD_EPS) ** 2, 0.0),
                            axis=1, keepdims=True))
    per_row = jnp.maximum(d_ap - d_an + MARGIN, 0.0)             # (TM, 1)

    row_t = r0 + lax.broadcasted_iota(jnp.int32, (tm, 1), 0)
    valid = ((pos_cnt > 0.0) & (row_t < n_true)).astype(jnp.float32)

    # lane-dense (TM, 128) output block: lane0 = contribution, lane1 = valid flag.
    lane = lax.broadcasted_iota(jnp.int32, (tm, 128), 1)
    out_ref[...] = jnp.where(lane == 0, per_row * valid,
                             jnp.where(lane == 1, valid, 0.0))


def triplet_average(embedding, labels, *, row_tile=128, sel_matmul_dtype=jnp.float32):
    """TripletAverage(margin=1.2, threshold=0.5).forward(embedding, labels)."""
    N, D = embedding.shape
    L = labels.shape[1]

    tm = _round_up(min(row_tile, _round_up(N, 8)), 8)
    n_pad = _round_up(N, tm)
    dp = _round_up(D + 1, 128)        # +1 lane for the fused count column
    lp = _round_up(L + 2, 128)        # +2 lanes for the fused nnz columns

    emb_p = jnp.zeros((n_pad, dp), jnp.float32).at[:N, :D].set(embedding.astype(jnp.float32))
    lab_p = jnp.zeros((n_pad, lp), jnp.float32).at[:N, :L].set(labels.astype(jnp.float32))

    # bf16 is exact for the {0,1,3,-nnz} label operands as long as nnz <= 256.
    label_mm_dtype = jnp.bfloat16 if L <= 256 else jnp.float32
    # The selection matmul defaults to f32 to keep ~1e-4 parity with the torch
    # reference; pass sel_matmul_dtype=jnp.bfloat16 for ~3x MXU rate (v5e/v6e/v7x)
    # at a ~1e-3 loss-value error.
    kern = functools.partial(_triplet_avg_kernel, n_true=N, d_true=D, tm=tm,
                             dp=dp, lp=lp, label_mm_dtype=label_mm_dtype,
                             sel_mm_dtype=sel_matmul_dtype)

    parts = pl.pallas_call(
        kern,
        out_shape=jax.ShapeDtypeStruct((n_pad, 128), jnp.float32),
        grid=(n_pad // tm,),
        in_specs=[pl.BlockSpec((n_pad, dp), lambda i: (0, 0)),   # resident across steps
                  pl.BlockSpec((n_pad, lp), lambda i: (0, 0))],
        out_specs=pl.BlockSpec((tm, 128), lambda i: (i, 0)),
        compiler_params=pltpu.CompilerParams(
            dimension_semantics=("parallel",),        # row tiles are independent (v7x 2x TC)
            vmem_limit_bytes=32 * 1024 * 1024),       # above v5e's 16 MiB default
    )(emb_p, lab_p)

    num = jnp.sum(parts[:, 0])
    den = jnp.sum(parts[:, 1])
    # den == 0 (no valid anchor) -> 0.0 by convention (documented deviation).
    return num / jnp.maximum(den, 1.0)


def triplet_average_reference(embedding, labels):
    """Pure-JAX reference with the module's exact math (for a sanity check)."""
    emb = embedding / jnp.maximum(
        jnp.linalg.norm(embedding, axis=1, keepdims=True), NORM_EPS)
    b = (labels != 0).astype(jnp.float32)
    inter = b @ b.T
    nnz = b.sum(axis=1, keepdims=True)
    union = nnz + nnz.T - inter
    dist = jnp.where(union > 0, (union - inter) / union, 0.0)
    N = emb.shape[0]
    lp = (dist <= THRESHOLD).astype(jnp.float32) - jnp.eye(N, dtype=jnp.float32)
    valid = (lp.sum(axis=1, keepdims=True) > 0).astype(jnp.float32)
    pos_sel = (lp != 0).astype(jnp.float32)
    neg_sel = (lp != 1).astype(jnp.float32)
    pos_mean = pos_sel @ emb / jnp.maximum(pos_sel.sum(1, keepdims=True), 1.0)
    neg_mean = neg_sel @ emb / jnp.maximum(neg_sel.sum(1, keepdims=True), 1.0)
    d_ap = jnp.sqrt(jnp.sum((emb - pos_mean + PD_EPS) ** 2, axis=1, keepdims=True))
    d_an = jnp.sqrt(jnp.sum((emb - neg_mean + PD_EPS) ** 2, axis=1, keepdims=True))
    per = jnp.maximum(d_ap - d_an + MARGIN, 0.0)
    return jnp.sum(per * valid) / jnp.maximum(jnp.sum(valid), 1.0)


if __name__ == "__main__":
    key = jax.random.PRNGKey(0)
    N, D, L = 8, 32, 16
    k_emb, k_lab = jax.random.split(key)

    embedding = jax.random.normal(k_emb, (N, D), dtype=jnp.float32)

    # multi-hot labels; duplicate the first half so every anchor has positives,
    # and force column 0 on so no label row is all-zero (well-defined jaccard).
    half = (jax.random.uniform(k_lab, (N // 2, L)) < 0.4).astype(jnp.float32)
    half = half.at[:, 0].set(1.0)
    labels = jnp.concatenate([half, half], axis=0)

    loss = triplet_average(embedding, labels)
    jax.block_until_ready(loss)

    ref = triplet_average_reference(embedding, labels)
    # tolerance accounts for the approx (EUP) per-row reciprocals; all matmuls
    # and comparisons are otherwise exact.
    assert jnp.allclose(loss, ref, atol=5e-3), (float(loss), float(ref))

    print("KERNEL_OK")
</pallas_src>

<mosaic_0001>
module attributes {stable_mosaic.version = 11 : i64} {
  func.func @_triplet_avg_kernel(%arg0: i32, %arg1: memref<8x128xf32, #tpu.memory_space<vmem>>, %arg2: memref<8x128xf32, #tpu.memory_space<vmem>>, %arg3: memref<8x128xf32, #tpu.memory_space<vmem>>) attributes {dimension_semantics = [#tpu.dimension_semantics<parallel>], iteration_bounds = array<i64: 1>, scalar_prefetch = 0 : i64, scratch_operands = 0 : i64, tpu.core_type = #tpu.core_type<tc>, window_params = [{pipeline_mode = #tpu.pipeline_mode<synchronous>, transform_indices = @transform_0, window_bounds = array<i64: 8, 128>}, {pipeline_mode = #tpu.pipeline_mode<synchronous>, transform_indices = @transform_1, window_bounds = array<i64: 8, 128>}, {transform_indices = @transform_2, window_bounds = array<i64: 8, 128>}]} {
    %c8_i32 = arith.constant 8 : i32
    %0 = arith.muli %arg0, %c8_i32 : i32
    %1 = tpu.assume_multiple %0, 8 : i32
    %c0 = arith.constant 0 : index
    %c0_0 = arith.constant 0 : index
    %2 = vector.load %arg1[%c0, %c0_0] : memref<8x128xf32, #tpu.memory_space<vmem>>, vector<8x128xf32>
    %3 = arith.mulf %2, %2 : vector<8x128xf32>
    %cst = arith.constant dense<0.000000e+00> : vector<8xf32>
    %4 = vector.multi_reduction <add>, %3, %cst [1] : vector<8x128xf32> to vector<8xf32>
    %5 = vector.shape_cast %4 : vector<8xf32> to vector<8x1xf32>
    %6 = math.sqrt %5 : vector<8x1xf32>
    %cst_1 = arith.constant 9.99999996E-13 : f32
    %7 = vector.broadcast %cst_1 : f32 to vector<8x1xf32>
    %8 = arith.maximumf %6, %7 : vector<8x1xf32>
    %cst_2 = arith.constant 1.000000e+00 : f32
    %9 = vector.broadcast %cst_2 : f32 to vector<8x1xf32>
    %10 = arith.divf %9, %8 : vector<8x1xf32>
    %11 = vector.broadcast %10 : vector<8x1xf32> to vector<8x128xf32>
    %12 = arith.mulf %2, %11 : vector<8x128xf32>
    %13 = tpu.iota {dimensions = array<i32: 1>} : vector<8x128xi32>
    %14 = tpu.iota {dimensions = array<i32: 0>} : vector<8x128xi32>
    %c127_i32 = arith.constant 127 : i32
    %15 = vector.broadcast %c127_i32 : i32 to vector<8x128xi32>
    %16 = arith.cmpi eq, %13, %15 : vector<8x128xi32>
    %c8_i32_3 = arith.constant 8 : i32
    %17 = vector.broadcast %c8_i32_3 : i32 to vector<8x128xi32>
    %18 = arith.cmpi slt, %14, %17 : vector<8x128xi32>
    %19 = arith.andi %16, %18 : vector<8x128xi1>
    %20 = arith.extui %19 : vector<8x128xi1> to vector<8x128xi32>
    %21 = arith.sitofp %20 : vector<8x128xi32> to vector<8x128xf32>
    %22 = arith.addf %12, %21 : vector<8x128xf32>
    %cst_4 = arith.constant dense<0.000000e+00> : vector<128xf32>
    %23 = vector.multi_reduction <add>, %22, %cst_4 [0] : vector<8x128xf32> to vector<128xf32>
    %24 = vector.shape_cast %23 : vector<128xf32> to vector<1x128xf32>
    %c0_5 = arith.constant 0 : index
    %c0_6 = arith.constant 0 : index
    %25 = vector.load %arg2[%c0_5, %c0_6] : memref<8x128xf32, #tpu.memory_space<vmem>>, vector<8x128xf32>
    %cst_7 = arith.constant 0.000000e+00 : f32
    %26 = vector.broadcast %cst_7 : f32 to vector<8x128xf32>
    %27 = arith.cmpf one, %25, %26 : vector<8x128xf32>
    %28 = arith.extui %27 : vector<8x128xi1> to vector<8x128xi32>
    %29 = arith.sitofp %28 : vector<8x128xi32> to vector<8x128xf32>
    %cst_8 = arith.constant dense<0.000000e+00> : vector<8xf32>
    %30 = vector.multi_reduction <add>, %29, %cst_8 [1] : vector<8x128xf32> to vector<8xf32>
    %31 = vector.shape_cast %30 : vector<8xf32> to vector<8x1xf32>
    %32 = tpu.iota {dimensions = array<i32: 1>} : vector<8x128xi32>
    %c126_i32 = arith.constant 126 : i32
    %33 = vector.broadcast %c126_i32 : i32 to vector<8x128xi32>
    %34 = arith.cmpi eq, %32, %33 : vector<8x128xi32>
    %c127_i32_9 = arith.constant 127 : i32
    %35 = vector.broadcast %c127_i32_9 : i32 to vector<8x128xi32>
    %36 = arith.cmpi eq, %32, %35 : vector<8x128xi32>
    %cst_10 = arith.constant 0.000000e+00 : f32
    %37 = vector.broadcast %cst_10 : f32 to vector<8x1xf32>
    %38 = arith.subf %37, %31 : vector<8x1xf32>
    %39 = vector.shape_cast %38 : vector<8x1xf32> to vector<8x1xf32>
    %40 = vector.broadcast %39 : vector<8x1xf32> to vector<8x128xf32>
    %41 = arith.select %36, %40, %29 : vector<8x128xi1>, vector<8x128xf32>
    %cst_11 = arith.constant 1.000000e+00 : f32
    %42 = vector.broadcast %cst_11 : f32 to vector<8x128xf32>
    %43 = arith.select %34, %42, %41 : vector<8x128xi1>, vector<8x128xf32>
    %44 = arith.truncf %43 : vector<8x128xf32> to vector<8x128xbf16>
    %45 = arith.index_cast %1 : i32 to index
    %c0_12 = arith.constant 0 : index
    %46 = vector.load %arg2[%45, %c0_12] : memref<8x128xf32, #tpu.memory_space<vmem>>, vector<8x128xf32>
    %cst_13 = arith.constant 0.000000e+00 : f32
    %47 = vector.broadcast %cst_13 : f32 to vector<8x128xf32>
    %48 = arith.cmpf one, %46, %47 : vector<8x128xf32>
    %49 = arith.extui %48 : vector<8x128xi1> to vector<8x128xi32>
    %50 = arith.sitofp %49 : vector<8x128xi32> to vector<8x128xf32>
    %cst_14 = arith.constant dense<0.000000e+00> : vector<8xf32>
    %51 = vector.multi_reduction <add>, %50, %cst_14 [1] : vector<8x128xf32> to vector<8xf32>
    %52 = vector.shape_cast %51 : vector<8xf32> to vector<8x1xf32>
    %53 = tpu.iota {dimensions = array<i32: 1>} : vector<8x128xi32>
    %c126_i32_15 = arith.constant 126 : i32
    %54 = vector.broadcast %c126_i32_15 : i32 to vector<8x128xi32>
    %55 = arith.cmpi eq, %53, %54 : vector<8x128xi32>
    %cst_16 = arith.constant 0.000000e+00 : f32
    %56 = vector.broadcast %cst_16 : f32 to vector<8x1xf32>
    %57 = arith.subf %56, %52 : vector<8x1xf32>
    %c127_i32_17 = arith.constant 127 : i32
    %58 = vector.broadcast %c127_i32_17 : i32 to vector<8x128xi32>
    %59 = arith.cmpi eq, %53, %58 : vector<8x128xi32>
    %cst_18 = arith.constant 3.000000e+00 : f32
    %60 = vector.broadcast %cst_18 : f32 to vector<8x128xf32>
    %61 = arith.mulf %60, %50 : vector<8x128xf32>
    %cst_19 = arith.constant 1.000000e+00 : f32
    %62 = vector.broadcast %cst_19 : f32 to vector<8x128xf32>
    %63 = arith.select %59, %62, %61 : vector<8x128xi1>, vector<8x128xf32>
    %64 = vector.shape_cast %57 : vector<8x1xf32> to vector<8x1xf32>
    %65 = vector.broadcast %64 : vector<8x1xf32> to vector<8x128xf32>
    %66 = arith.select %55, %65, %63 : vector<8x128xi1>, vector<8x128xf32>
    %67 = arith.truncf %66 : vector<8x128xf32> to vector<8x128xbf16>
    %cst_20 = arith.constant dense<0.000000e+00> : vector<8x8xf32>
    %68 = tpu.matmul %67, %44, %cst_20 {dimension_numbers = #tpu.dot_dimension_numbers<[1], [1], [0], [0], [0, 0, 1, 0], [], []>} : vector<8x128xbf16>, vector<8x128xbf16>, vector<8x8xf32> -> vector<8x8xf32>
    %69 = tpu.iota {dimensions = array<i32: 0>} : vector<8x8xi32>
    %70 = vector.broadcast %1 : i32 to vector<8x8xi32>
    %71 = arith.addi %70, %69 : vector<8x8xi32>
    %72 = tpu.iota {dimensions = array<i32: 1>} : vector<8x8xi32>
    %cst_21 = arith.constant 0.000000e+00 : f32
    %73 = vector.broadcast %cst_21 : f32 to vector<8x8xf32>
    %74 = arith.cmpf oge, %68, %73 : vector<8x8xf32>
    %75 = arith.cmpi ne, %71, %72 : vector<8x8xi32>
    %76 = arith.andi %74, %75 : vector<8x8xi1>
    %c8_i32_22 = arith.constant 8 : i32
    %77 = vector.broadcast %c8_i32_22 : i32 to vector<8x8xi32>
    %78 = arith.cmpi slt, %72, %77 : vector<8x8xi32>
    %79 = arith.andi %76, %78 : vector<8x8xi1>
    %80 = arith.extui %79 : vector<8x8xi1> to vector<8x8xi32>
    %81 = arith.sitofp %80 : vector<8x8xi32> to vector<8x8xf32>
    %cst_23 = arith.constant dense<0.000000e+00> : vector<8x128xf32>
    %82 = tpu.matmul %81, %22, %cst_23 {dimension_numbers = #tpu.dot_dimension_numbers<[1], [0], [0], [1], [0, 0, 1, 1], [], []>} : vector<8x8xf32>, vector<8x128xf32>, vector<8x128xf32> -> vector<8x128xf32>
    %83 = vector.extract_strided_slice %82 {offsets = [0, 127], sizes = [8, 1], strides = [1, 1]} : vector<8x128xf32> to vector<8x1xf32>
    %84 = vector.broadcast %24 : vector<1x128xf32> to vector<8x128xf32>
    %85 = arith.subf %84, %82 : vector<8x128xf32>
    %86 = vector.extract_strided_slice %24 {offsets = [0, 127], sizes = [1, 1], strides = [1, 1]} : vector<1x128xf32> to vector<1x1xf32>
    %87 = vector.broadcast %86 : vector<1x1xf32> to vector<8x1xf32>
    %88 = arith.subf %87, %83 : vector<8x1xf32>
    %cst_24 = arith.constant 1.000000e+00 : f32
    %89 = vector.broadcast %cst_24 : f32 to vector<8x1xf32>
    %90 = arith.maximumf %83, %89 : vector<8x1xf32>
    %91 = tpu.reciprocal %90 {approx = true} : vector<8x1xf32> -> vector<8x1xf32>
    %cst_25 = arith.constant 1.000000e+00 : f32
    %92 = vector.broadcast %cst_25 : f32 to vector<8x1xf32>
    %93 = arith.maximumf %88, %92 : vector<8x1xf32>
    %94 = tpu.reciprocal %93 {approx = true} : vector<8x1xf32> -> vector<8x1xf32>
    %95 = vector.broadcast %91 : vector<8x1xf32> to vector<8x128xf32>
    %96 = arith.mulf %82, %95 : vector<8x128xf32>
    %97 = vector.broadcast %94 : vector<8x1xf32> to vector<8x128xf32>
    %98 = arith.mulf %85, %97 : vector<8x128xf32>
    %99 = arith.index_cast %1 : i32 to index
    %c0_26 = arith.constant 0 : index
    %100 = vector.load %arg1[%99, %c0_26] : memref<8x128xf32, #tpu.memory_space<vmem>>, vector<8x128xf32>
    %101 = arith.mulf %100, %100 : vector<8x128xf32>
    %cst_27 = arith.constant dense<0.000000e+00> : vector<8xf32>
    %102 = vector.multi_reduction <add>, %101, %cst_27 [1] : vector<8x128xf32> to vector<8xf32>
    %103 = vector.shape_cast %102 : vector<8xf32> to vector<8x1xf32>
    %104 = math.sqrt %103 : vector<8x1xf32>
    %cst_28 = arith.constant 9.99999996E-13 : f32
    %105 = vector.broadcast %cst_28 : f32 to vector<8x1xf32>
    %106 = arith.maximumf %104, %105 : vector<8x1xf32>
    %cst_29 = arith.constant 1.000000e+00 : f32
    %107 = vector.broadcast %cst_29 : f32 to vector<8x1xf32>
    %108 = arith.divf %107, %106 : vector<8x1xf32>
    %109 = vector.broadcast %108 : vector<8x1xf32> to vector<8x128xf32>
    %110 = arith.mulf %100, %109 : vector<8x128xf32>
    %111 = tpu.iota {dimensions = array<i32: 1>} : vector<8x128xi32>
    %c32_i32 = arith.constant 32 : i32
    %112 = vector.broadcast %c32_i32 : i32 to vector<8x128xi32>
    %113 = arith.cmpi slt, %111, %112 : vector<8x128xi32>
    %114 = arith.subf %110, %96 : vector<8x128xf32>
    %cst_30 = arith.constant 9.99999997E-7 : f32
    %115 = vector.broadcast %cst_30 : f32 to vector<8x128xf32>
    %116 = arith.addf %114, %115 : vector<8x128xf32>
    %117 = arith.mulf %116, %116 : vector<8x128xf32>
    %cst_31 = arith.constant 0.000000e+00 : f32
    %118 = vector.broadcast %cst_31 : f32 to vector<8x128xf32>
    %119 = arith.select %113, %117, %118 : vector<8x128xi1>, vector<8x128xf32>
    %cst_32 = arith.constant dense<0.000000e+00> : vector<8xf32>
    %120 = vector.multi_reduction <add>, %119, %cst_32 [1] : vector<8x128xf32> to vector<8xf32>
    %121 = vector.shape_cast %120 : vector<8xf32> to vector<8x1xf32>
    %122 = math.sqrt %121 : vector<8x1xf32>
    %123 = arith.subf %110, %98 : vector<8x128xf32>
    %cst_33 = arith.constant 9.99999997E-7 : f32
    %124 = vector.broadcast %cst_33 : f32 to vector<8x128xf32>
    %125 = arith.addf %123, %124 : vector<8x128xf32>
    %126 = arith.mulf %125, %125 : vector<8x128xf32>
    %cst_34 = arith.constant 0.000000e+00 : f32
    %127 = vector.broadcast %cst_34 : f32 to vector<8x128xf32>
    %128 = arith.select %113, %126, %127 : vector<8x128xi1>, vector<8x128xf32>
    %cst_35 = arith.constant dense<0.000000e+00> : vector<8xf32>
    %129 = vector.multi_reduction <add>, %128, %cst_35 [1] : vector<8x128xf32> to vector<8xf32>
    %130 = vector.shape_cast %129 : vector<8xf32> to vector<8x1xf32>
    %131 = math.sqrt %130 : vector<8x1xf32>
    %132 = arith.subf %122, %131 : vector<8x1xf32>
    %cst_36 = arith.constant 1.200000e+00 : f32
    %133 = vector.broadcast %cst_36 : f32 to vector<8x1xf32>
    %134 = arith.addf %132, %133 : vector<8x1xf32>
    %cst_37 = arith.constant 0.000000e+00 : f32
    %135 = vector.broadcast %cst_37 : f32 to vector<8x1xf32>
    %136 = arith.maximumf %134, %135 : vector<8x1xf32>
    %137 = tpu.iota {dimensions = array<i32: 0>} : vector<8x1xi32>
    %138 = vector.broadcast %1 : i32 to vector<8x1xi32>
    %139 = arith.addi %138, %137 : vector<8x1xi32>
    %cst_38 = arith.constant 0.000000e+00 : f32
    %140 = vector.broadcast %cst_38 : f32 to vector<8x1xf32>
    %141 = arith.cmpf ogt, %83, %140 : vector<8x1xf32>
    %c8_i32_39 = arith.constant 8 : i32
    %142 = vector.broadcast %c8_i32_39 : i32 to vector<8x1xi32>
    %143 = arith.cmpi slt, %139, %142 : vector<8x1xi32>
    %144 = arith.andi %141, %143 : vector<8x1xi1>
    %145 = arith.extui %144 : vector<8x1xi1> to vector<8x1xi32>
    %146 = arith.sitofp %145 : vector<8x1xi32> to vector<8x1xf32>
    %147 = tpu.iota {dimensions = array<i32: 1>} : vector<8x128xi32>
    %c0_i32 = arith.constant 0 : i32
    %148 = vector.broadcast %c0_i32 : i32 to vector<8x128xi32>
    %149 = arith.cmpi eq, %147, %148 : vector<8x128xi32>
    %150 = arith.mulf %136, %146 : vector<8x1xf32>
    %c1_i32 = arith.constant 1 : i32
    %151 = vector.broadcast %c1_i32 : i32 to vector<8x128xi32>
    %152 = arith.cmpi eq, %147, %151 : vector<8x128xi32>
    %cst_40 = arith.constant 0.000000e+00 : f32
    %153 = vector.shape_cast %146 : vector<8x1xf32> to vector<8x1xf32>
    %154 = vector.broadcast %153 : vector<8x1xf32> to vector<8x128xf32>
    %155 = vector.broadcast %cst_40 : f32 to vector<8x128xf32>
    %156 = arith.select %152, %154, %155 : vector<8x128xi1>, vector<8x128xf32>
    %157 = vector.shape_cast %150 : vector<8x1xf32> to vector<8x1xf32>
    %158 = vector.broadcast %157 : vector<8x1xf32> to vector<8x128xf32>
    %159 = arith.select %149, %158, %156 : vector<8x128xi1>, vector<8x128xf32>
    %c0_41 = arith.constant 0 : index
    %c0_42 = arith.constant 0 : index
    %160 = vector.load %arg3[%c0_41, %c0_42] : memref<8x128xf32, #tpu.memory_space<vmem>>, vector<8x128xf32>
    tpu.vector_store %arg3[%c0_41, %c0_42], %159 {strides = array<i32>} : memref<8x128xf32, #tpu.memory_space<vmem>>, vector<8x128xf32>,
    return
  }
  func.func @transform_0(%arg0: i32) -> (i32, i32) {
    %c0_i32 = arith.constant 0 : i32
    %c0_i32_0 = arith.constant 0 : i32
    %c0_i32_1 = arith.constant 0 : i32
    return %c0_i32, %c0_i32_0 : i32, i32
  }
  func.func @transform_1(%arg0: i32) -> (i32, i32) {
    %c0_i32 = arith.constant 0 : i32
    %c0_i32_0 = arith.constant 0 : i32
    %c0_i32_1 = arith.constant 0 : i32
    return %c0_i32, %c0_i32_0 : i32, i32
  }
  func.func @transform_2(%arg0: i32) -> (i32, i32) {
    %c0_i32 = arith.constant 0 : i32
    %c0_i32_0 = arith.constant 0 : i32
    return %arg0, %c0_i32 : i32, i32
  }
}

</mosaic_0001>

<llo_original>
// kernel: tpu_custom_call.1
$region0: #{tpu_custom_call.1}
  #allocation0 [shape = 'u32[]', space=smem, size = 0x4, offset = 0x4, fixed_abs, tag = 'smem constant byte address 0x4 - core index']
  #allocation1 [shape = 'u32[144,128]{1,0:T(1,128)}', space=vmem, size = 0x12000, scoped, tag = 'internal scratch']
  %s0 = inlined_call_operand.hbm [shape: f32[8,128], index: 0, kind: input, shape index: {}]
  %s1 = inlined_call_operand.hbm [shape: f32[8,128], index: 1, kind: input, shape index: {}]
  %s2 = inlined_call_operand.hbm [shape: f32[8,128], index: 2, kind: output, shape index: {}]
  %s3 = sld [smem:[#allocation0]]
  $region26: #{tpu_custom_call.1} parent=0
    _
  %s5 = ssub.s32 1, %s3
  %s6 = scalar_select 0, %s5, %s3
  $region1: #{tpu_custom_call.1} parent=0
    #allocation2 [shape = 'u8[4096]{0}', space=vmem, size = 0x1000, scoped, tag = 'input window, operand 0, single buffered']
    #allocation3 [shape = 's32[1]{0}', space=sflag, size = 0x4, scoped, tag = 'scoped memory for tpu_custom_call.1']
    #allocation4 [shape = 's32[1]{0}', space=sflag, size = 0x4, scoped, tag = 'scoped memory for tpu_custom_call.1']
    #allocation5 [shape = 'u8[4096]{0}', space=vmem, size = 0x1000, scoped, tag = 'input window, operand 1, single buffered']
    #allocation6 [shape = 's32[1]{0}', space=sflag, size = 0x4, scoped, tag = 'scoped memory for tpu_custom_call.1']
    #allocation7 [shape = 'u8[4096]{0}', space=vmem, size = 0x1000, scoped, tag = 'output window, operand 0, single buffered']
    %7 = vsyncpa [#allocation3], 0
    %8 = vsyncpa [#allocation6], 0
    %9 = vsyncpa [#allocation4], 0
    // Predicated region
    $region2: #{tpu_custom_call.1} parent=1 // pred_check
      _
    $region3: #{tpu_custom_call.1} parent=1 // pred_check_branch
      %11 = sbr.rel (0) target = $region5
    $region4: #{tpu_custom_call.1} parent=1 // pred_region
      %s13 = ssub.s32 128, 128
      %14 = vsyncadd [#allocation3], %s13
      %s16 = sshll.u32 [#allocation2], 4
      %s17 = int_to_ptr.vmem [resolvable:$true] %s16
      %19 = dma.hbm_to_vmem [thread:$0]  %s0, 128, %s17, [#allocation3]
    $region5: #{tpu_custom_call.1} parent=1 // pred_fallthru
      _
    // Predicated region
    $region6: #{tpu_custom_call.1} parent=1 // pred_check
      _
    $region7: #{tpu_custom_call.1} parent=1 // pred_check_branch
      %21 = sbr.rel (0) target = $region9
    $region8: #{tpu_custom_call.1} parent=1 // pred_region
      %s23 = ssub.s32 128, 128
      %24 = vsyncadd [#allocation6], %s23
      %s26 = sshll.u32 [#allocation5], 4
      %s27 = int_to_ptr.vmem [resolvable:$true] %s26
      %29 = dma.hbm_to_vmem [thread:$0]  %s1, 128, %s27, [#allocation6]
    $region9: #{tpu_custom_call.1} parent=1 // pred_fallthru
      _
    // Predicated region
    $region10: #{tpu_custom_call.1} parent=1 // pred_check
      _
    $region11: #{tpu_custom_call.1} parent=1 // pred_check_branch
      %31 = sbr.rel (0) target = $region13
    $region12: #{tpu_custom_call.1} parent=1 // pred_region
      %32 = dma.done [#allocation3], 128
    $region13: #{tpu_custom_call.1} parent=1 // pred_fallthru
      _
    // Predicated region
    $region14: #{tpu_custom_call.1} parent=1 // pred_check
      _
    $region15: #{tpu_custom_call.1} parent=1 // pred_check_branch
      %34 = sbr.rel (0) target = $region17
    $region16: #{tpu_custom_call.1} parent=1 // pred_region
      %35 = dma.done [#allocation6], 128
    $region17: #{tpu_custom_call.1} parent=1 // pred_fallthru
      _
    %s37 = smul.u32 0, 8
    %v38 = vld [vmem:[#allocation2] sm:$0xff]
    %v39 = vmul.f32 %v38, %v38
    %40 = vadd.xlane.f32.xlu0 %v39
    %v41 = vpop.xlane.xlu0 %40
    %v42 = vrsqrt.pop %v41
    %v43 = vmul.f32 %v41, %v42
    %vm44 = vcmp.eq.f32.partialorder %v41, inf
    %v45 = vsel %vm44, %v41, %v43
    %vm46 = vcmp.eq.f32.partialorder %v41, 0.0
    %v47 = vand.u32 %v41, 2147483648
    %v48 = vsel %vm46, %v47, %v45
    %v49 = vmax.f32 %v48, 1e-12
    %v50 = vrcp.pop %v49
    %v51 = vmul.f32 1.0, %v50
    %v52 = vmul.f32 %v38, %v51
    %v53 = vlaneseq
    %v54 = vand.u32 %v53, 127
    %v55 = vlaneseq
    %v56 = vshrl.u32 %v55, 7
    %vm57 = vcmp.eq.s32.totalorder %v54, 127
    %vm58 = vcmp.lt.s32.totalorder %v56, 8
    %vm59 = vmand %vm57, %vm58
    %v60 = vsel %vm59, 1, 0
    %v61 = vcvt.s32.f32 %v60
    %v62 = vadd.f32 %v52, %v61
    %v63 = vrot.slane %v62, 4
    %v64 = vadd.f32 %v62, %v63
    %v65 = vrot.slane %v64, 2
    %v66 = vadd.f32 %v64, %v65
    %v67 = vrot.slane %v66, 1
    %v68 = vadd.f32 %v66, %v67
    %v69 = vld [vmem:[#allocation5] sm:$0xff]
    %vm70 = vcmp.ne.f32.partialorder %v69, 0.0
    %v71 = vsel %vm70, 1, 0
    %v72 = vcvt.s32.f32 %v71
    %73 = vadd.xlane.f32.xlu0 %v72
    %v74 = vpop.xlane.xlu0 %73
    %vm75 = vcmp.eq.s32.totalorder %v54, 126
    %v76 = vsub.f32 0.0, %v74
    %v77 = vsel %vm57, %v76, %v72
    %v78 = vsel %vm75, 1.0, %v77
    %v79 = vpack.c.bf16 %v78, %v78
    %s80 = scalar_lea.vmem [#allocation5], %s37
    %v81 = vld [vmem:[%s80] sm:$0xff]
    %vm82 = vcmp.ne.f32.partialorder %v81, 0.0
    %v83 = vsel %vm82, 1, 0
    %v84 = vcvt.s32.f32 %v83
    %85 = vadd.xlane.f32.xlu0 %v84
    %v86 = vpop.xlane.xlu0 %85
    %v87 = vsub.f32 0.0, %v86
    %v88 = vmul.f32 %v84, 3.0
    %v89 = vsel %vm57, 1.0, %v88
    %v90 = vsel %vm75, %v87, %v89
    %v91 = vpack.c.bf16 %v90, %v90
    %92 = vmatprep.subr.bf16.mxu0 0
    %93 = vmatpush1.bf16.xpose.msra.mxu0 %v79
    %94 = vmatprep.subr.bf16.mxu0 0
    %95 = vmatpush1.bf16.xpose.msra.mxu0 0
    %96 = vmatprep.subr.bf16.mxu0 0
    %97 = vmatpush1.bf16.xpose.msra.mxu0 0
    %98 = vmatprep.subr.bf16.mxu0 0
    %99 = vmatpush1.bf16.xpose.msra.mxu0 0
    %100 = vmatprep.subr.bf16.mxu0 0
    %101 = vmatpush1.bf16.xpose.msra.mxu0 0
    %102 = vmatprep.subr.bf16.mxu0 0
    %103 = vmatpush1.bf16.xpose.msra.mxu0 0
    %104 = vmatprep.subr.bf16.mxu0 0
    %105 = vmatpush1.bf16.xpose.msra.mxu0 0
    %106 = vmatprep.subr.bf16.mxu0 0
    %107 = vmatpush1.bf16.xpose.msra.mxu0 0
    %108 = vmatprep.subr.bf16.mxu0 0
    %109 = vmatpush1.bf16.xpose.msra.mxu0 0
    %110 = vmatprep.subr.bf16.mxu0 0
    %111 = vmatpush1.bf16.xpose.msra.mxu0 0
    %112 = vmatprep.subr.bf16.mxu0 0
    %113 = vmatpush1.bf16.xpose.msra.mxu0 0
    %114 = vmatprep.subr.bf16.mxu0 0
    %115 = vmatpush1.bf16.xpose.msra.mxu0 0
    %116 = vmatprep.subr.bf16.mxu0 0
    %117 = vmatpush1.bf16.xpose.msra.mxu0 0
    %118 = vmatprep.subr.bf16.mxu0 0
    %119 = vmatpush1.bf16.xpose.msra.mxu0 0
    %120 = vmatprep.subr.bf16.mxu0 0
    %121 = vmatpush1.bf16.xpose.msra.mxu0 0
    %122 = vmatprep.subr.bf16.mxu0 0
    %123 = vmatpush1.bf16.xpose.msra.mxu0 0
    %124 = vmatprep.mubr.bf16.mxu0 0
    %125 = vmatmul.mubr.bf16.gmra.mrb[0].mxu0 %v91
    %v126 = vpop.f32.mrb[0].mxu0
    %v127 = vadd.f32 0.0, %v126
    %v128 = vpop.f32.mrb[0].mxu0
    %v129 = vpop.f32.mrb[0].mxu0
    %v130 = vpop.f32.mrb[0].mxu0
    %131 = vdwg.mxu0
    %v132 = vstv %s37
    %v133 = vadd.s32 %v132, %v56
    %vm134 = vcmp.ge.f32.partialorder %v127, 0.0
    %vm135 = vcmp.ne.s32.totalorder %v133, %v54
    %vm136 = vmand %vm134, %vm135
    %vm137 = vcmp.lt.s32.totalorder %v54, 8
    %vm138 = vmand %vm136, %vm137
    %v139 = vsel %vm138, 1, 0
    %v140 = vcvt.s32.f32 %v139
    %vm141 = vcmask 64512
    %v143 = vsel %vm141, %v140, 0
    %145 = vmatprep.subr.mxu0 0.0
    %146 = vmatpush1.msra.mxu0 %v62
    %147 = vmatprep.subr.mxu0 0.0
    %148 = vmatpush1.msra.mxu0 0.0
    %149 = vmatprep.subr.mxu0 0.0
    %150 = vmatpush1.msra.mxu0 0.0
    %151 = vmatprep.subr.mxu0 0.0
    %152 = vmatpush1.msra.mxu0 0.0
    %153 = vmatprep.subr.mxu0 0.0
    %154 = vmatpush1.msra.mxu0 0.0
    %155 = vmatprep.subr.mxu0 0.0
    %156 = vmatpush1.msra.mxu0 0.0
    %157 = vmatprep.subr.mxu0 0.0
    %158 = vmatpush1.msra.mxu0 0.0
    %159 = vmatprep.subr.mxu0 0.0
    %160 = vmatpush1.msra.mxu0 0.0
    %161 = vmatprep.subr.mxu0 0.0
    %162 = vmatpush1.msra.mxu0 0.0
    %163 = vmatprep.subr.mxu0 0.0
    %164 = vmatpush1.msra.mxu0 0.0
    %165 = vmatprep.subr.mxu0 0.0
    %166 = vmatpush1.msra.mxu0 0.0
    %167 = vmatprep.subr.mxu0 0.0
    %168 = vmatpush1.msra.mxu0 0.0
    %169 = vmatprep.subr.mxu0 0.0
    %170 = vmatpush1.msra.mxu0 0.0
    %171 = vmatprep.subr.mxu0 0.0
    %172 = vmatpush1.msra.mxu0 0.0
    %173 = vmatprep.subr.mxu0 0.0
    %174 = vmatpush1.msra.mxu0 0.0
    %175 = vmatprep.subr.mxu0 0.0
    %176 = vmatpush1.msra.mxu0 0.0
    %177 = vmatprep.subr.mxu0 0.0
    %178 = vmatpush1.msra.mxu0 0.0
    %179 = vmatprep.subr.mxu0 0.0
    %180 = vmatpush1.msra.mxu0 0.0
    %181 = vmatprep.subr.mxu0 0.0
    %182 = vmatpush1.msra.mxu0 0.0
    %183 = vmatprep.subr.mxu0 0.0
    %184 = vmatpush1.msra.mxu0 0.0
    %185 = vmatprep.subr.mxu0 0.0
    %186 = vmatpush1.msra.mxu0 0.0
    %187 = vmatprep.subr.mxu0 0.0
    %188 = vmatpush1.msra.mxu0 0.0
    %189 = vmatprep.subr.mxu0 0.0
    %190 = vmatpush1.msra.mxu0 0.0
    %191 = vmatprep.subr.mxu0 0.0
    %192 = vmatpush1.msra.mxu0 0.0
    %193 = vmatprep.subr.mxu0 0.0
    %194 = vmatpush1.msra.mxu0 0.0
    %195 = vmatprep.subr.mxu0 0.0
    %196 = vmatpush1.msra.mxu0 0.0
    %197 = vmatprep.subr.mxu0 0.0
    %198 = vmatpush1.msra.mxu0 0.0
    %199 = vmatprep.subr.mxu0 0.0
    %200 = vmatpush1.msra.mxu0 0.0
    %201 = vmatprep.subr.mxu0 0.0
    %202 = vmatpush1.msra.mxu0 0.0
    %203 = vmatprep.subr.mxu0 0.0
    %204 = vmatpush1.msra.mxu0 0.0
    %205 = vmatprep.subr.mxu0 0.0
    %206 = vmatpush1.msra.mxu0 0.0
    %207 = vmatprep.subr.mxu0 0.0
    %208 = vmatpush1.msra.mxu0 0.0
    %209 = vmatprep.mubr.f32.mxu0 0.0
    %210 = vmatmul.mubr.f32.gmra.mrb[0].mxu0 %v143
    %v211 = vpop.f32.mrb[0].mxu0
    %v212 = vadd.f32 0.0, %v211
    %v213 = vpop.f32.mrb[0].mxu0
    %214 = vdwg.mxu0
    %v215 = vsub.f32 %v68, %v212
    %v216 = vmax.f32 %v212, 1.0
    %v217 = vrcp.pop %v216
    %v218 = vmax.f32 %v215, 1.0
    %v219 = vrcp.pop %v218
    %221 = vset.pattern.permute.xlu0 127
    %222 = vperm.xlu0 %221, %v217
    %v223 = vpop.permute.xlu0 %222
    %v225 = vmul.f32 %v212, %v223
    %227 = vset.pattern.permute.xlu0 127
    %228 = vperm.xlu0 %227, %v219
    %v229 = vpop.permute.xlu0 %228
    %v231 = vmul.f32 %v215, %v229
    %s232 = scalar_lea.vmem [#allocation2], %s37
    %v233 = vld [vmem:[%s232] sm:$0xff]
    %v234 = vmul.f32 %v233, %v233
    %235 = vadd.xlane.f32.xlu0 %v234
    %v236 = vpop.xlane.xlu0 %235
    %v237 = vrsqrt.pop %v236
    %v238 = vmul.f32 %v236, %v237
    %vm239 = vcmp.eq.f32.partialorder %v236, inf
    %v240 = vsel %vm239, %v236, %v238
    %vm241 = vcmp.eq.f32.partialorder %v236, 0.0
    %v242 = vand.u32 %v236, 2147483648
    %v243 = vsel %vm241, %v242, %v240
    %v244 = vmax.f32 %v243, 1e-12
    %v245 = vrcp.pop %v244
    %v246 = vmul.f32 1.0, %v245
    %v247 = vmul.f32 %v233, %v246
    %vm248 = vcmp.lt.s32.totalorder %v54, 32
    %v249 = vsub.f32 %v247, %v225
    %v250 = vadd.f32 %v249, 1e-06
    %v251 = vmul.f32 %v250, %v250
    %v252 = vsel %vm248, %v251, 0.0
    %253 = vadd.xlane.f32.xlu0 %v252
    %v254 = vpop.xlane.xlu0 %253
    %v255 = vrsqrt.pop %v254
    %v256 = vmul.f32 %v254, %v255
    %vm257 = vcmp.eq.f32.partialorder %v254, inf
    %v258 = vsel %vm257, %v254, %v256
    %vm259 = vcmp.eq.f32.partialorder %v254, 0.0
    %v260 = vand.u32 %v254, 2147483648
    %v261 = vsel %vm259, %v260, %v258
    %v262 = vsub.f32 %v247, %v231
    %v263 = vadd.f32 %v262, 1e-06
    %v264 = vmul.f32 %v263, %v263
    %v265 = vsel %vm248, %v264, 0.0
    %266 = vadd.xlane.f32.xlu0 %v265
    %v267 = vpop.xlane.xlu0 %266
    %v268 = vrsqrt.pop %v267
    %v269 = vmul.f32 %v267, %v268
    %vm270 = vcmp.eq.f32.partialorder %v267, inf
    %v271 = vsel %vm270, %v267, %v269
    %vm272 = vcmp.eq.f32.partialorder %v267, 0.0
    %v273 = vand.u32 %v267, 2147483648
    %v274 = vsel %vm272, %v273, %v271
    %v275 = vsub.f32 %v261, %v274
    %v276 = vadd.f32 %v275, 1.2
    %v277 = vmax.f32 %v276, 0.0
    %vm278 = vcmp.gt.f32.partialorder %v212, 0.0
    %vm279 = vcmp.lt.s32.totalorder %v133, 8
    %vm280 = vmand %vm278, %vm279
    %v281 = vsel %vm280, 1, 0
    %v282 = vcvt.s32.f32 %v281
    %vm283 = vcmp.eq.s32.totalorder %v54, 0
    %v284 = vmul.f32 %v277, %v282
    %vm285 = vcmp.eq.s32.totalorder %v54, 1
    %287 = vset.pattern.permute.xlu0 127
    %288 = vperm.xlu0 %287, %v282
    %v289 = vpop.permute.xlu0 %288
    %v291 = vsel %vm285, %v289, 0.0
    %293 = vset.pattern.permute.xlu0 127
    %294 = vperm.xlu0 %293, %v284
    %v295 = vpop.permute.xlu0 %294
    %v297 = vsel %vm283, %v295, %v291
    %298 = vst [vmem:[#allocation7] sm:$0xff] %v297
    // Predicated region
    $region18: #{tpu_custom_call.1} parent=1 // pred_check
      _
    $region19: #{tpu_custom_call.1} parent=1 // pred_check_branch
      %300 = sbr.rel (0) target = $region21
    $region20: #{tpu_custom_call.1} parent=1 // pred_region
      %s302 = ssub.s32 128, 128
      %303 = vsyncadd [#allocation4], %s302
      %s305 = sshll.u32 [#allocation7], 4
      %s306 = int_to_ptr.vmem [resolvable:$true] %s305
      %308 = dma.vmem_to_hbm [thread:$0]  %s306, 128, %s2, [#allocation4]
    $region21: #{tpu_custom_call.1} parent=1 // pred_fallthru
      _
    // Predicated region
    $region22: #{tpu_custom_call.1} parent=1 // pred_check
      _
    $region23: #{tpu_custom_call.1} parent=1 // pred_check_branch
      %310 = sbr.rel (0) target = $region25
    $region24: #{tpu_custom_call.1} parent=1 // pred_region
      %311 = dma.done [#allocation4], 128
    $region25: #{tpu_custom_call.1} parent=1 // pred_fallthru
      _
    %312 = vsyncpa [#allocation3], 1
    %313 = vsyncpa [#allocation6], 1
    %314 = vsyncpa [#allocation4], 1

</llo_original>
